<compile_context>
chip_gen: v5e
topology: v5e:2x2
jax: 0.10.0
libtpu: 0.0.40
codegen_flags: <defaults>
</compile_context>

<pallas_src>
import jax
import jax.numpy as jnp
from jax.experimental import pallas as pl
from jax.experimental.pallas import tpu as pltpu


def _round_up(n, m):
    return ((n + m - 1) // m) * m


def fc_network_kernel(x_ref, t_ref, w1x_ref, w1t_ref, b1_ref,
                      w2_ref, b2_ref, w3_ref, b3_ref, o_ref):
    """One batch tile of the 3-layer MLP. Weights are VMEM-resident."""
    cdt = w1x_ref.dtype                               # MXU operand dtype (bf16/f32)
    x = x_ref[...].astype(cdt)                        # (TB, in_dim)
    t = t_ref[...].astype(cdt)                        # (TB, 1)

    # Fused concat: [x, t] @ W1 == x @ W1[:in_dim] + t @ W1[in_dim:in_dim+1]
    # Both contributions on the MXU (rank-1 dot for the t column).
    h1 = jnp.dot(x, w1x_ref[...], preferred_element_type=jnp.float32)
    h1 = h1 + jnp.dot(t, w1t_ref[...], preferred_element_type=jnp.float32)
    h1 = jnp.maximum(h1 + b1_ref[...], 0.0)           # ReLU, f32

    h2 = jnp.dot(h1.astype(cdt), w2_ref[...], preferred_element_type=jnp.float32)
    h2 = jnp.maximum(h2 + b2_ref[...], 0.0)           # ReLU, f32

    out = jnp.dot(h2.astype(cdt), w3_ref[...], preferred_element_type=jnp.float32)
    o_ref[...] = (out + b3_ref[...]).astype(o_ref.dtype)


def prepare_params(params, input_dim, *, use_bf16=True):
    """One-time weight preprocessing: split W1 for the fused concat, pad the
    hidden dim to a lane multiple, cast MXU operands. Call once, reuse."""
    w1, b1, w2, b2, w3, b3 = params
    hidden = w1.shape[1]
    out_dim = w3.shape[1]
    HP = _round_up(hidden, 128)
    wdt = jnp.bfloat16 if use_bf16 else jnp.float32

    w1x = jnp.pad(w1[:input_dim], ((0, 0), (0, HP - hidden))).astype(wdt)
    w1t = jnp.pad(w1[input_dim:input_dim + 1], ((0, 0), (0, HP - hidden))).astype(wdt)
    b1p = jnp.pad(b1, ((0, 0), (0, HP - hidden))).astype(jnp.float32)
    w2p = jnp.pad(w2, ((0, HP - hidden), (0, HP - hidden))).astype(wdt)
    b2p = jnp.pad(b2, ((0, 0), (0, HP - hidden))).astype(jnp.float32)
    w3p = jnp.pad(w3, ((0, HP - hidden), (0, 0))).astype(wdt)   # (HP, out_dim)
    b3p = b3.astype(jnp.float32)                                # (1, out_dim)

    meta = dict(input_dim=input_dim, hidden_padded=HP, out_dim=out_dim)
    return (w1x, w1t, b1p, w2p, b2p, w3p, b3p), meta


def fc_network_forward(x, t, prepared, *, tile_b=2048):
    """x: (B, input_dim) f32; t: (B, 1) f32. Returns (B, out_dim) f32."""
    (w1x, w1t, b1p, w2p, b2p, w3p, b3p), meta = prepared
    B, in_dim = x.shape
    assert in_dim == meta["input_dim"]
    HP = meta["hidden_padded"]
    out_dim = meta["out_dim"]

    # Batch tiling: multiple of 8 (f32 sublane); cap at half the padded batch
    # so the grid has >= 2 steps when possible (v7x megacore split).
    B8 = _round_up(B, 8)
    tb = min(tile_b, _round_up(max(B8 // 2, 8), 8))
    tb = max(tb, 8)
    Bp = _round_up(B8, tb)
    if Bp != B:
        x = jnp.pad(x, ((0, Bp - B), (0, 0)))
        t = jnp.pad(t, ((0, Bp - B), (0, 0)))

    grid = (Bp // tb,)
    act = lambda feat: pl.BlockSpec((tb, feat), lambda i: (i, 0))   # batch-tiled
    res = lambda shape: pl.BlockSpec(shape, lambda i: (0, 0))       # VMEM-resident

    wbytes = w1x.dtype.itemsize
    flops = 2 * Bp * (in_dim * HP + HP + HP * HP + HP * out_dim)
    bytes_accessed = (4 * Bp * (in_dim + 1 + out_dim)
                      + wbytes * ((in_dim + 1) * HP + HP * HP + HP * out_dim)
                      + 4 * (2 * HP + out_dim))

    out = pl.pallas_call(
        fc_network_kernel,
        out_shape=jax.ShapeDtypeStruct((Bp, out_dim), jnp.float32),
        grid=grid,
        in_specs=[
            act(in_dim), act(1),
            res((in_dim, HP)), res((1, HP)), res((1, HP)),
            res((HP, HP)), res((1, HP)),
            res((HP, out_dim)), res((1, out_dim)),
        ],
        out_specs=act(out_dim),
        compiler_params=pltpu.CompilerParams(
            dimension_semantics=("parallel",),
            vmem_limit_bytes=32 * 1024 * 1024,
        ),
        cost_estimate=pl.CostEstimate(
            flops=flops, transcendentals=0, bytes_accessed=bytes_accessed),
    )(x, t, w1x, w1t, b1p, w2p, b2p, w3p, b3p)

    return out[:B] if Bp != B else out


def init_params(key, input_dim, num_hidden):
    """Deterministic synthetic parameters matching nn.Linear shapes.

    PyTorch stores W as (out, in); we store the transpose (in, out) so the
    kernel computes x @ W directly.
    """
    k1, k2, k3, k4, k5, k6 = jax.random.split(key, 6)

    def lin(kw, kb, fan_in, fan_out):
        bound = 1.0 / jnp.sqrt(jnp.float32(fan_in))
        w = jax.random.uniform(kw, (fan_in, fan_out), jnp.float32, -bound, bound)
        b = jax.random.uniform(kb, (1, fan_out), jnp.float32, -bound, bound)
        return w, b

    w1, b1 = lin(k1, k2, input_dim + 1, num_hidden)
    w2, b2 = lin(k3, k4, num_hidden, num_hidden)
    w3, b3 = lin(k5, k6, num_hidden, input_dim)
    return (w1, b1, w2, b2, w3, b3)


def _reference(x, t, params):
    w1, b1, w2, b2, w3, b3 = params
    xt = jnp.concatenate([x, t], axis=1)
    h = jnp.maximum(xt @ w1 + b1, 0.0)
    h = jnp.maximum(h @ w2 + b2, 0.0)
    return h @ w3 + b3


if __name__ == "__main__":
    input_dim = 16
    num_hidden = 32

    key = jax.random.PRNGKey(0)
    kx, kt, kp = jax.random.split(key, 3)
    params = init_params(kp, input_dim, num_hidden)

    prep_f32 = prepare_params(params, input_dim, use_bf16=False)
    prep_bf16 = prepare_params(params, input_dim, use_bf16=True)

    # Case 1: small batch (B=8), f32 MXU operands -> tight tolerance.
    x = jax.random.normal(kx, (8, input_dim), jnp.float32)
    t = jax.random.uniform(kt, (8, 1), jnp.float32)
    out = jax.block_until_ready(fc_network_forward(x, t, prep_f32))
    ref = _reference(x, t, params)
    assert out.shape == (8, input_dim)
    assert jnp.allclose(out, ref, atol=1e-3, rtol=1e-3)

    # Case 2: batch not a multiple of the tile (exercises batch padding),
    # bf16 MXU operands -> looser tolerance.
    x2 = jax.random.normal(kx, (20, input_dim), jnp.float32)
    t2 = jax.random.uniform(kt, (20, 1), jnp.float32)
    out2 = jax.block_until_ready(fc_network_forward(x2, t2, prep_bf16))
    ref2 = _reference(x2, t2, params)
    assert out2.shape == (20, input_dim)
    assert jnp.allclose(out2, ref2, atol=5e-2, rtol=5e-2)

    # Case 3: multi-step grid (grid=3) with a small explicit tile, bf16.
    x3 = jax.random.normal(kx, (40, input_dim), jnp.float32)
    t3 = jax.random.uniform(kt, (40, 1), jnp.float32)
    out3 = jax.block_until_ready(fc_network_forward(x3, t3, prep_bf16, tile_b=16))
    ref3 = _reference(x3, t3, params)
    assert out3.shape == (40, input_dim)
    assert jnp.allclose(out3, ref3, atol=5e-2, rtol=5e-2)

    print("KERNEL_OK")
</pallas_src>

<mosaic_0001>
module attributes {stable_mosaic.version = 11 : i64} {
  func.func @fc_network_kernel(%arg0: i32, %arg1: memref<8x16xf32, #tpu.memory_space<vmem>>, %arg2: memref<8x1xf32, #tpu.memory_space<vmem>>, %arg3: memref<16x128xf32, #tpu.memory_space<vmem>>, %arg4: memref<1x128xf32, #tpu.memory_space<vmem>>, %arg5: memref<1x128xf32, #tpu.memory_space<vmem>>, %arg6: memref<128x128xf32, #tpu.memory_space<vmem>>, %arg7: memref<1x128xf32, #tpu.memory_space<vmem>>, %arg8: memref<128x16xf32, #tpu.memory_space<vmem>>, %arg9: memref<1x16xf32, #tpu.memory_space<vmem>>, %arg10: memref<8x16xf32, #tpu.memory_space<vmem>>) attributes {dimension_semantics = [#tpu.dimension_semantics<parallel>], iteration_bounds = array<i64: 1>, scalar_prefetch = 0 : i64, scratch_operands = 0 : i64, tpu.core_type = #tpu.core_type<tc>, window_params = [{transform_indices = @transform_0, window_bounds = array<i64: 8, 16>}, {transform_indices = @transform_1, window_bounds = array<i64: 8, 1>}, {pipeline_mode = #tpu.pipeline_mode<synchronous>, transform_indices = @transform_2, window_bounds = array<i64: 16, 128>}, {pipeline_mode = #tpu.pipeline_mode<synchronous>, transform_indices = @transform_3, window_bounds = array<i64: 1, 128>}, {pipeline_mode = #tpu.pipeline_mode<synchronous>, transform_indices = @transform_4, window_bounds = array<i64: 1, 128>}, {pipeline_mode = #tpu.pipeline_mode<synchronous>, transform_indices = @transform_5, window_bounds = array<i64: 128, 128>}, {pipeline_mode = #tpu.pipeline_mode<synchronous>, transform_indices = @transform_6, window_bounds = array<i64: 1, 128>}, {pipeline_mode = #tpu.pipeline_mode<synchronous>, transform_indices = @transform_7, window_bounds = array<i64: 128, 16>}, {pipeline_mode = #tpu.pipeline_mode<synchronous>, transform_indices = @transform_8, window_bounds = array<i64: 1, 16>}, {transform_indices = @transform_9, window_bounds = array<i64: 8, 16>}]} {
    %c0 = arith.constant 0 : index
    %c0_0 = arith.constant 0 : index
    %0 = vector.load %arg1[%c0, %c0_0] : memref<8x16xf32, #tpu.memory_space<vmem>>, vector<8x16xf32>
    %c0_1 = arith.constant 0 : index
    %c0_2 = arith.constant 0 : index
    %1 = vector.load %arg2[%c0_1, %c0_2] : memref<8x1xf32, #tpu.memory_space<vmem>>, vector<8x1xf32>
    %c0_3 = arith.constant 0 : index
    %c0_4 = arith.constant 0 : index
    %2 = vector.load %arg3[%c0_3, %c0_4] : memref<16x128xf32, #tpu.memory_space<vmem>>, vector<16x128xf32>
    %cst = arith.constant dense<0.000000e+00> : vector<8x128xf32>
    %3 = tpu.matmul %0, %2, %cst {dimension_numbers = #tpu.dot_dimension_numbers<[1], [0], [0], [1], [0, 0, 1, 1], [], []>} : vector<8x16xf32>, vector<16x128xf32>, vector<8x128xf32> -> vector<8x128xf32>
    %c0_5 = arith.constant 0 : index
    %c0_6 = arith.constant 0 : index
    %4 = vector.load %arg4[%c0_5, %c0_6] : memref<1x128xf32, #tpu.memory_space<vmem>>, vector<1x128xf32>
    %cst_7 = arith.constant dense<0.000000e+00> : vector<8x128xf32>
    %5 = tpu.matmul %1, %4, %cst_7 {dimension_numbers = #tpu.dot_dimension_numbers<[1], [0], [0], [1], [0, 0, 1, 1], [], []>} : vector<8x1xf32>, vector<1x128xf32>, vector<8x128xf32> -> vector<8x128xf32>
    %6 = arith.addf %3, %5 : vector<8x128xf32>
    %c0_8 = arith.constant 0 : index
    %c0_9 = arith.constant 0 : index
    %7 = vector.load %arg5[%c0_8, %c0_9] : memref<1x128xf32, #tpu.memory_space<vmem>>, vector<1x128xf32>
    %8 = vector.broadcast %7 : vector<1x128xf32> to vector<8x128xf32>
    %9 = arith.addf %6, %8 : vector<8x128xf32>
    %cst_10 = arith.constant 0.000000e+00 : f32
    %10 = vector.broadcast %cst_10 : f32 to vector<8x128xf32>
    %11 = arith.maximumf %9, %10 : vector<8x128xf32>
    %c0_11 = arith.constant 0 : index
    %c0_12 = arith.constant 0 : index
    %12 = vector.load %arg6[%c0_11, %c0_12] : memref<128x128xf32, #tpu.memory_space<vmem>>, vector<128x128xf32>
    %cst_13 = arith.constant dense<0.000000e+00> : vector<8x128xf32>
    %13 = tpu.matmul %11, %12, %cst_13 {dimension_numbers = #tpu.dot_dimension_numbers<[1], [0], [0], [1], [0, 0, 1, 1], [], []>} : vector<8x128xf32>, vector<128x128xf32>, vector<8x128xf32> -> vector<8x128xf32>
    %c0_14 = arith.constant 0 : index
    %c0_15 = arith.constant 0 : index
    %14 = vector.load %arg7[%c0_14, %c0_15] : memref<1x128xf32, #tpu.memory_space<vmem>>, vector<1x128xf32>
    %15 = vector.broadcast %14 : vector<1x128xf32> to vector<8x128xf32>
    %16 = arith.addf %13, %15 : vector<8x128xf32>
    %cst_16 = arith.constant 0.000000e+00 : f32
    %17 = vector.broadcast %cst_16 : f32 to vector<8x128xf32>
    %18 = arith.maximumf %16, %17 : vector<8x128xf32>
    %c0_17 = arith.constant 0 : index
    %c0_18 = arith.constant 0 : index
    %19 = vector.load %arg8[%c0_17, %c0_18] : memref<128x16xf32, #tpu.memory_space<vmem>>, vector<128x16xf32>
    %cst_19 = arith.constant dense<0.000000e+00> : vector<8x16xf32>
    %20 = tpu.matmul %18, %19, %cst_19 {dimension_numbers = #tpu.dot_dimension_numbers<[1], [0], [0], [1], [0, 0, 1, 1], [], []>} : vector<8x128xf32>, vector<128x16xf32>, vector<8x16xf32> -> vector<8x16xf32>
    %c0_20 = arith.constant 0 : index
    %c0_21 = arith.constant 0 : index
    %21 = vector.load %arg9[%c0_20, %c0_21] : memref<1x16xf32, #tpu.memory_space<vmem>>, vector<1x16xf32>
    %22 = vector.broadcast %21 : vector<1x16xf32> to vector<8x16xf32>
    %23 = arith.addf %20, %22 : vector<8x16xf32>
    %c0_22 = arith.constant 0 : index
    %c0_23 = arith.constant 0 : index
    %24 = vector.load %arg10[%c0_22, %c0_23] : memref<8x16xf32, #tpu.memory_space<vmem>>, vector<8x16xf32>
    tpu.vector_store %arg10[%c0_22, %c0_23], %23 {strides = array<i32>} : memref<8x16xf32, #tpu.memory_space<vmem>>, vector<8x16xf32>,
    return
  }
  func.func @transform_0(%arg0: i32) -> (i32, i32) {
    %c0_i32 = arith.constant 0 : i32
    %c0_i32_0 = arith.constant 0 : i32
    return %arg0, %c0_i32 : i32, i32
  }
  func.func @transform_1(%arg0: i32) -> (i32, i32) {
    %c0_i32 = arith.constant 0 : i32
    %c0_i32_0 = arith.constant 0 : i32
    return %arg0, %c0_i32 : i32, i32
  }
  func.func @transform_2(%arg0: i32) -> (i32, i32) {
    %c0_i32 = arith.constant 0 : i32
    %c0_i32_0 = arith.constant 0 : i32
    %c0_i32_1 = arith.constant 0 : i32
    return %c0_i32, %c0_i32_0 : i32, i32
  }
  func.func @transform_3(%arg0: i32) -> (i32, i32) {
    %c0_i32 = arith.constant 0 : i32
    %c0_i32_0 = arith.constant 0 : i32
    %c0_i32_1 = arith.constant 0 : i32
    return %c0_i32, %c0_i32_0 : i32, i32
  }
  func.func @transform_4(%arg0: i32) -> (i32, i32) {
    %c0_i32 = arith.constant 0 : i32
    %c0_i32_0 = arith.constant 0 : i32
    %c0_i32_1 = arith.constant 0 : i32
    return %c0_i32, %c0_i32_0 : i32, i32
  }
  func.func @transform_5(%arg0: i32) -> (i32, i32) {
    %c0_i32 = arith.constant 0 : i32
    %c0_i32_0 = arith.constant 0 : i32
    %c0_i32_1 = arith.constant 0 : i32
    return %c0_i32, %c0_i32_0 : i32, i32
  }
  func.func @transform_6(%arg0: i32) -> (i32, i32) {
    %c0_i32 = arith.constant 0 : i32
    %c0_i32_0 = arith.constant 0 : i32
    %c0_i32_1 = arith.constant 0 : i32
    return %c0_i32, %c0_i32_0 : i32, i32
  }
  func.func @transform_7(%arg0: i32) -> (i32, i32) {
    %c0_i32 = arith.constant 0 : i32
    %c0_i32_0 = arith.constant 0 : i32
    %c0_i32_1 = arith.constant 0 : i32
    return %c0_i32, %c0_i32_0 : i32, i32
  }
  func.func @transform_8(%arg0: i32) -> (i32, i32) {
    %c0_i32 = arith.constant 0 : i32
    %c0_i32_0 = arith.constant 0 : i32
    %c0_i32_1 = arith.constant 0 : i32
    return %c0_i32, %c0_i32_0 : i32, i32
  }
  func.func @transform_9(%arg0: i32) -> (i32, i32) {
    %c0_i32 = arith.constant 0 : i32
    %c0_i32_0 = arith.constant 0 : i32
    return %arg0, %c0_i32 : i32, i32
  }
}

</mosaic_0001>

<llo_original>
// kernel: tpu_custom_call.1
$region0: #{tpu_custom_call.1}
  #allocation0 [shape = 'u32[]', space=smem, size = 0x4, offset = 0x4, fixed_abs, tag = 'smem constant byte address 0x4 - core index']
  #allocation1 [shape = 'u32[72,128]{1,0:T(1,128)}', space=vmem, size = 0x9000, scoped, tag = 'internal scratch']
  %s0 = inlined_call_operand.vmem [shape: f32[8,16], index: 0, kind: input, shape index: {}]
  %s1 = inlined_call_operand.vmem [shape: f32[8,1], index: 1, kind: input, shape index: {}]
  %s2 = inlined_call_operand.vmem [shape: f32[16,128], index: 2, kind: input, shape index: {}]
  %s3 = inlined_call_operand.vmem [shape: f32[1,128], index: 3, kind: input, shape index: {}]
  %s4 = inlined_call_operand.vmem [shape: f32[1,128], index: 4, kind: input, shape index: {}]
  %s5 = inlined_call_operand.vmem [shape: f32[128,128], index: 5, kind: input, shape index: {}]
  %s6 = inlined_call_operand.vmem [shape: f32[1,128], index: 6, kind: input, shape index: {}]
  %s7 = inlined_call_operand.vmem [shape: f32[128,16], index: 7, kind: input, shape index: {}]
  %s8 = inlined_call_operand.vmem [shape: f32[1,16], index: 8, kind: input, shape index: {}]
  %s9 = inlined_call_operand.hbm [shape: f32[8,16], index: 9, kind: output, shape index: {}]
  %s10 = sld [smem:[#allocation0]]
  $region46: #{tpu_custom_call.1} parent=0
    _
  %s12 = ssub.s32 1, %s10
  %s13 = scalar_select 0, %s12, %s10
  $region1: #{tpu_custom_call.1} parent=0
    #allocation2 [shape = 'u8[4096]{0}', space=vmem, size = 0x1000, scoped, tag = 'output window, operand 0, single buffered']
    #allocation3 [shape = 's32[1]{0}', space=sflag, size = 0x4, scoped, tag = 'scoped memory for tpu_custom_call.1']
    %14 = vsyncpa [#allocation3], 0
    // Predicated region
    $region2: #{tpu_custom_call.1} parent=1 // pred_check
      _
    $region3: #{tpu_custom_call.1} parent=1 // pred_check_branch
      %16 = sbr.rel (0) target = $region5
    $region4: #{tpu_custom_call.1} parent=1 // pred_region
      _
    $region5: #{tpu_custom_call.1} parent=1 // pred_fallthru
      _
    // Predicated region
    $region6: #{tpu_custom_call.1} parent=1 // pred_check
      _
    $region7: #{tpu_custom_call.1} parent=1 // pred_check_branch
      %18 = sbr.rel (0) target = $region9
    $region8: #{tpu_custom_call.1} parent=1 // pred_region
      _
    $region9: #{tpu_custom_call.1} parent=1 // pred_fallthru
      _
    // Predicated region
    $region10: #{tpu_custom_call.1} parent=1 // pred_check
      _
    $region11: #{tpu_custom_call.1} parent=1 // pred_check_branch
      %20 = sbr.rel (0) target = $region13
    $region12: #{tpu_custom_call.1} parent=1 // pred_region
      _
    $region13: #{tpu_custom_call.1} parent=1 // pred_fallthru
      _
    // Predicated region
    $region14: #{tpu_custom_call.1} parent=1 // pred_check
      _
    $region15: #{tpu_custom_call.1} parent=1 // pred_check_branch
      %22 = sbr.rel (0) target = $region17
    $region16: #{tpu_custom_call.1} parent=1 // pred_region
      _
    $region17: #{tpu_custom_call.1} parent=1 // pred_fallthru
      _
    // Predicated region
    $region18: #{tpu_custom_call.1} parent=1 // pred_check
      _
    $region19: #{tpu_custom_call.1} parent=1 // pred_check_branch
      %24 = sbr.rel (0) target = $region21
    $region20: #{tpu_custom_call.1} parent=1 // pred_region
      _
    $region21: #{tpu_custom_call.1} parent=1 // pred_fallthru
      _
    // Predicated region
    $region22: #{tpu_custom_call.1} parent=1 // pred_check
      _
    $region23: #{tpu_custom_call.1} parent=1 // pred_check_branch
      %26 = sbr.rel (0) target = $region25
    $region24: #{tpu_custom_call.1} parent=1 // pred_region
      _
    $region25: #{tpu_custom_call.1} parent=1 // pred_fallthru
      _
    // Predicated region
    $region26: #{tpu_custom_call.1} parent=1 // pred_check
      _
    $region27: #{tpu_custom_call.1} parent=1 // pred_check_branch
      %28 = sbr.rel (0) target = $region29
    $region28: #{tpu_custom_call.1} parent=1 // pred_region
      _
    $region29: #{tpu_custom_call.1} parent=1 // pred_fallthru
      _
    // Predicated region
    $region30: #{tpu_custom_call.1} parent=1 // pred_check
      _
    $region31: #{tpu_custom_call.1} parent=1 // pred_check_branch
      %30 = sbr.rel (0) target = $region33
    $region32: #{tpu_custom_call.1} parent=1 // pred_region
      _
    $region33: #{tpu_custom_call.1} parent=1 // pred_fallthru
      _
    // Predicated region
    $region34: #{tpu_custom_call.1} parent=1 // pred_check
      _
    $region35: #{tpu_custom_call.1} parent=1 // pred_check_branch
      %32 = sbr.rel (0) target = $region37
    $region36: #{tpu_custom_call.1} parent=1 // pred_region
      _
    $region37: #{tpu_custom_call.1} parent=1 // pred_fallthru
      _
    %v33 = vld [vmem:[%s0] sm:$0xff]
    %v34 = vld [vmem:[%s1] sm:$0xff]
    %v35 = vld [vmem:[%s2] sm:$0xff]
    %v36 = vld [vmem:[%s2 + $0x8] sm:$0xff]
    %v37 = vld [vmem:[%s3] sm:$0x1]
    %vm38 = vcmask 7168
    %v40 = vsel %vm38, %v34, 0
    %vm42 = vcmask 1040384
    %v44 = vsel %vm42, %v37, 0
    %46 = vmatpush.msra.mxu0 0.0
    %47 = vmatpush.msra.mxu0 0.0
    %48 = vmatpush.msra.mxu0 0.0
    %49 = vmatpush.msra.mxu0 0.0
    %50 = vmatpush.msra.mxu0 0.0
    %51 = vmatpush.msra.mxu0 0.0
    %52 = vmatpush.msra.mxu0 0.0
    %53 = vmatpush.msra.mxu0 0.0
    %54 = vmatpush.msra.mxu0 0.0
    %55 = vmatpush.msra.mxu0 0.0
    %56 = vmatpush.msra.mxu0 0.0
    %57 = vmatpush.msra.mxu0 0.0
    %58 = vmatpush.msra.mxu0 0.0
    %59 = vmatpush.msra.mxu0 0.0
    %60 = vmatpush.msra.mxu0 0.0
    %61 = vmatpush.msra.mxu0 %v44
    %62 = vmatmul.f32.gmra.mxu0 %v40
    %v63 = vpop.f32.mrf.mxu0
    %v64 = vadd.f32 0.0, %v63
    %65 = vdwg.mxu0
    %vm66 = vcmask 130048
    %v68 = vsel %vm66, %v33, 0
    %70 = vmatpush.msra.mxu0 0.0
    %71 = vmatpush.msra.mxu0 0.0
    %72 = vmatpush.msra.mxu0 0.0
    %73 = vmatpush.msra.mxu0 0.0
    %74 = vmatpush.msra.mxu0 0.0
    %75 = vmatpush.msra.mxu0 0.0
    %76 = vmatpush.msra.mxu0 0.0
    %77 = vmatpush.msra.mxu0 0.0
    %78 = vmatpush.msra.mxu0 0.0
    %79 = vmatpush.msra.mxu0 0.0
    %80 = vmatpush.msra.mxu0 0.0
    %81 = vmatpush.msra.mxu0 0.0
    %82 = vmatpush.msra.mxu0 0.0
    %83 = vmatpush.msra.mxu0 0.0
    %84 = vmatpush.msra.mxu0 %v36
    %85 = vmatpush.msra.mxu0 %v35
    %86 = vmatmul.f32.gmra.mxu0 %v68
    %v87 = vpop.f32.mrf.mxu0
    %v88 = vadd.f32 %v64, %v87
    %89 = vdwg.mxu0
    %v90 = vld [vmem:[%s4] sm:$0x1]
    %v92 = vperm.slane %v90, 0
    %v94 = vadd.f32 %v88, %v92
    %v95 = vmax.f32 %v94, 0.0
    %v96 = vld [vmem:[%s5] sm:$0xff]
    %v97 = vld [vmem:[%s5 + $0x8] sm:$0xff]
    %v98 = vld [vmem:[%s5 + $0x10] sm:$0xff]
    %v99 = vld [vmem:[%s5 + $0x18] sm:$0xff]
    %v100 = vld [vmem:[%s5 + $0x20] sm:$0xff]
    %v101 = vld [vmem:[%s5 + $0x28] sm:$0xff]
    %v102 = vld [vmem:[%s5 + $0x30] sm:$0xff]
    %v103 = vld [vmem:[%s5 + $0x38] sm:$0xff]
    %v104 = vld [vmem:[%s5 + $0x40] sm:$0xff]
    %v105 = vld [vmem:[%s5 + $0x48] sm:$0xff]
    %v106 = vld [vmem:[%s5 + $0x50] sm:$0xff]
    %v107 = vld [vmem:[%s5 + $0x58] sm:$0xff]
    %v108 = vld [vmem:[%s5 + $0x60] sm:$0xff]
    %v109 = vld [vmem:[%s5 + $0x68] sm:$0xff]
    %v110 = vld [vmem:[%s5 + $0x70] sm:$0xff]
    %v111 = vld [vmem:[%s5 + $0x78] sm:$0xff]
    %v112 = vld [vmem:[%s6] sm:$0x1]
    %v114 = vperm.slane %v112, 0
    %116 = vmatpush.msra.mxu0 %v111
    %117 = vmatpush.msra.mxu0 %v110
    %118 = vmatpush.msra.mxu0 %v109
    %119 = vmatpush.msra.mxu0 %v108
    %120 = vmatpush.msra.mxu0 %v107
    %121 = vmatpush.msra.mxu0 %v106
    %122 = vmatpush.msra.mxu0 %v105
    %123 = vmatpush.msra.mxu0 %v104
    %124 = vmatpush.msra.mxu0 %v103
    %125 = vmatpush.msra.mxu0 %v102
    %126 = vmatpush.msra.mxu0 %v101
    %127 = vmatpush.msra.mxu0 %v100
    %128 = vmatpush.msra.mxu0 %v99
    %129 = vmatpush.msra.mxu0 %v98
    %130 = vmatpush.msra.mxu0 %v97
    %131 = vmatpush.msra.mxu0 %v96
    %132 = vmatmul.f32.gmra.mxu0 %v95
    %v133 = vpop.f32.mrf.mxu0
    %v134 = vadd.f32 %v114, %v133
    %135 = vdwg.mxu0
    %v136 = vmax.f32 %v134, 0.0
    %v137 = vld [vmem:[%s7] sm:$0xff]
    %v138 = vld [vmem:[%s7 + $0x8] sm:$0xff]
    %v139 = vld [vmem:[%s7 + $0x10] sm:$0xff]
    %v140 = vld [vmem:[%s7 + $0x18] sm:$0xff]
    %v141 = vld [vmem:[%s7 + $0x20] sm:$0xff]
    %v142 = vld [vmem:[%s7 + $0x28] sm:$0xff]
    %v143 = vld [vmem:[%s7 + $0x30] sm:$0xff]
    %v144 = vld [vmem:[%s7 + $0x38] sm:$0xff]
    %v145 = vld [vmem:[%s7 + $0x40] sm:$0xff]
    %v146 = vld [vmem:[%s7 + $0x48] sm:$0xff]
    %v147 = vld [vmem:[%s7 + $0x50] sm:$0xff]
    %v148 = vld [vmem:[%s7 + $0x58] sm:$0xff]
    %v149 = vld [vmem:[%s7 + $0x60] sm:$0xff]
    %v150 = vld [vmem:[%s7 + $0x68] sm:$0xff]
    %v151 = vld [vmem:[%s7 + $0x70] sm:$0xff]
    %v152 = vld [vmem:[%s7 + $0x78] sm:$0xff]
    %v153 = vld [vmem:[%s8] sm:$0x1]
    %v155 = vperm.slane %v153, 0
    %157 = vmatpush.msra.mxu0 %v152
    %158 = vmatpush.msra.mxu0 %v151
    %159 = vmatpush.msra.mxu0 %v150
    %160 = vmatpush.msra.mxu0 %v149
    %161 = vmatpush.msra.mxu0 %v148
    %162 = vmatpush.msra.mxu0 %v147
    %163 = vmatpush.msra.mxu0 %v146
    %164 = vmatpush.msra.mxu0 %v145
    %165 = vmatpush.msra.mxu0 %v144
    %166 = vmatpush.msra.mxu0 %v143
    %167 = vmatpush.msra.mxu0 %v142
    %168 = vmatpush.msra.mxu0 %v141
    %169 = vmatpush.msra.mxu0 %v140
    %170 = vmatpush.msra.mxu0 %v139
    %171 = vmatpush.msra.mxu0 %v138
    %172 = vmatpush.msra.mxu0 %v137
    %173 = vmatmul.f32.gmra.mxu0 %v136
    %v174 = vpop.f32.mrf.mxu0
    %v175 = vadd.f32 %v155, %v174
    %176 = vdwg.mxu0
    %177 = vst.msk [vmem:[#allocation2] sm:$0xff] %vm66, %v175
    // Predicated region
    $region38: #{tpu_custom_call.1} parent=1 // pred_check
      _
    $region39: #{tpu_custom_call.1} parent=1 // pred_check_branch
      %179 = sbr.rel (0) target = $region41
    $region40: #{tpu_custom_call.1} parent=1 // pred_region
      %181 = vsyncadd [#allocation3], 0
      %s183 = sshll.u32 [#allocation2], 4
      %s184 = int_to_ptr.vmem [resolvable:$true] %s183
      %s185 = sshll.u32 %s9, 4
      %s186 = int_to_ptr.hbm [resolvable:$true] %s185
      %188 = dma.vmem_to_hbm [thread:$0]  %s184, 128, %s186, [#allocation3]
    $region41: #{tpu_custom_call.1} parent=1 // pred_fallthru
      _
    // Predicated region
    $region42: #{tpu_custom_call.1} parent=1 // pred_check
      _
    $region43: #{tpu_custom_call.1} parent=1 // pred_check_branch
      %190 = sbr.rel (0) target = $region45
    $region44: #{tpu_custom_call.1} parent=1 // pred_region
      %192 = dma.done [#allocation3], 128
    $region45: #{tpu_custom_call.1} parent=1 // pred_fallthru
      _
    %193 = vsyncpa [#allocation3], 1

</llo_original>
